<compile_context>
chip_gen: v5e
topology: v5e:2x2
jax: 0.10.0
libtpu: 0.0.40
codegen_flags: <defaults>
</compile_context>

<pallas_src>
import functools
from typing import NamedTuple, Optional

import jax
import jax.numpy as jnp
from jax.experimental import pallas as pl
from jax.experimental.pallas import tpu as pltpu

LN_EPS = 1e-5  # PyTorch LayerNorm default eps


def _round_up(x: int, m: int) -> int:
    return ((x + m - 1) // m) * m


def _next_pow2(x: int) -> int:
    return 1 << max(0, (x - 1).bit_length())


def _choose_layout(channels: int):
    """Pick (fold, c_seg): each presented row holds `fold` samples, each padded
    to c_seg channels, so the lane width L = fold * c_seg is a multiple of 128."""
    if channels >= 128:
        return 1, _round_up(channels, 128)
    c_seg = min(_next_pow2(channels), 128)
    return 128 // c_seg, c_seg


def _vmem_capacity_bytes() -> int:
    try:
        return int(pltpu.get_tpu_info().vmem_capacity_bytes)
    except Exception:
        return 64 << 20  # conservative fallback: v7x per-TC VMEM


class SimbaParams(NamedTuple):
    w1: jax.Array               # (L, L) block-diagonal, MXU dtype
    b1: jax.Array               # (1, L) f32
    w2: jax.Array               # (L, L) block-diagonal, MXU dtype
    b2: jax.Array               # (1, L) f32
    avg: Optional[jax.Array]    # (L, L) f32 block-diag averaging matrix (fold > 1)
    channels: int
    c_seg: int
    fold: int


def prepare_simba_params(w1, b1, w2, b2, *, dot_dtype=jnp.bfloat16) -> SimbaParams:
    """Pack + cast the SimbaBlock parameters once (outside the per-call path).

    w1, w2: (C, C) stored as (in, out) == PyTorch `linear.weight.T`; b1, b2: (C,)."""
    C = w1.shape[0]
    fold, c_seg = _choose_layout(C)
    L = fold * c_seg
    pad = c_seg - C
    eye = jnp.eye(fold, dtype=jnp.float32)

    def pack_w(w):
        wp = jnp.pad(w.astype(jnp.float32), ((0, pad), (0, pad)))
        return jnp.kron(eye, wp).astype(dot_dtype)

    def pack_b(b):
        bp = jnp.pad(b.astype(jnp.float32), (0, pad))
        return jnp.tile(bp, fold).reshape(1, L)

    avg = None
    if fold > 1:
        a = jnp.pad(jnp.full((C, C), 1.0 / C, jnp.float32), ((0, pad), (0, pad)))
        avg = jnp.kron(eye, a)  # segment-mean matrix; zero at padded rows/cols

    return SimbaParams(pack_w(w1), pack_b(b1), pack_w(w2), pack_b(b2),
                       avg, C, c_seg, fold)


def simba_kernel(x_ref, w1_ref, b1_ref, w2_ref, b2_ref, *rest,
                 channels, c_seg, fold):
    if fold > 1:
        avg_ref, o_ref = rest
    else:
        (o_ref,) = rest

    x = x_ref[...].astype(jnp.float32)

    # LayerNorm (elementwise_affine=False) over each length-`channels` segment.
    if fold > 1:
        # Segmented mean/var via a block-diagonal averaging matmul: the data
        # stays lane-dense (no (TM, L) -> (TM*fold, C) relayout) and the MXU
        # processes all `fold` segments of the row at once.
        avg = avg_ref[...]
        mean = jnp.dot(x, avg, preferred_element_type=jnp.float32)
        centered = x - mean                    # exactly 0 at channel-padding lanes
        var = jnp.dot(centered * centered, avg, preferred_element_type=jnp.float32)
    else:
        inv_c = 1.0 / channels
        mean = jnp.sum(x, axis=-1, keepdims=True) * inv_c    # padded lanes hold 0
        centered = x - mean
        if c_seg != channels:
            lane = jax.lax.broadcasted_iota(jnp.int32, (1, x.shape[-1]), 1)
            centered = jnp.where(lane < channels, centered, 0.0)
        var = jnp.sum(centered * centered, axis=-1, keepdims=True) * inv_c
    xn = centered * jax.lax.rsqrt(var + LN_EPS)

    # MLP on block-diagonal packed weights: full-lane-width MXU matmuls.
    h = jnp.dot(xn.astype(w1_ref.dtype), w1_ref[...],
                preferred_element_type=jnp.float32) + b1_ref[...]
    h = jnp.maximum(h, 0.0)
    y = jnp.dot(h.astype(w2_ref.dtype), w2_ref[...],
                preferred_element_type=jnp.float32) + b2_ref[...]

    # Residual in f32; channel-padding lanes stay exactly 0.
    o_ref[...] = (x + y).astype(o_ref.dtype)


def simba_block(x, params: SimbaParams, *, tm_target=None, min_grid=4):
    """Apply the SimbaBlock forward pass.  x: (..., C)."""
    orig_shape = x.shape
    C = params.channels
    assert orig_shape[-1] == C
    fold, c_seg = params.fold, params.c_seg
    L = fold * c_seg

    itemsize = jnp.dtype(x.dtype).itemsize
    sublane = max(8, 32 // itemsize)

    x2d = x.reshape(-1, C)                       # free (contiguous)
    N = x2d.shape[0]

    # Channel padding only when C doesn't divide / isn't a multiple of 128.
    if c_seg != C:
        x2d = jnp.pad(x2d, ((0, 0), (0, c_seg - C)))
    # Minimal row padding: multiple of `fold` (so the reshape below is a free
    # contiguous merge) and at least one full sublane-aligned presented tile.
    n_rows = max(_round_up(N, fold), fold * sublane)
    if n_rows != N:
        x2d = jnp.pad(x2d, ((0, n_rows - N), (0, 0)))
    folded_n = n_rows // fold
    x_folded = x2d.reshape(folded_n, L)          # free (merges contiguous dims)

    vmem_cap = _vmem_capacity_bytes()
    if tm_target is None:
        # Bigger tiles on 128 MiB parts (v5e/v6e); 512 on v7x's 64 MiB per TC.
        tm_target = 1024 if vmem_cap >= (96 << 20) else 512
    # Keep at least `min_grid` grid steps so the "parallel" row axis can be
    # sharded across both TensorCores on v7x (and the pipeline has >1 step).
    tm = min(tm_target, max(1, -(-folded_n // max(1, min_grid))))
    tm = max(_round_up(tm, sublane), sublane)
    grid = (pl.cdiv(folded_n, tm),)              # ragged tail handled by Pallas

    dot_itemsize = jnp.dtype(params.w1.dtype).itemsize
    resident = 2 * L * L * dot_itemsize + 2 * L * 4
    if params.avg is not None:
        resident += L * L * 4

    # Resident params are never re-fetched (constant index_map); single-buffer
    # them once they are big enough for the extra buffer to matter.
    wkw = {}
    weight_bufs = 2
    if resident >= (8 << 20):
        wkw = dict(pipeline_mode=pl.Buffered(1))
        weight_bufs = 1

    tile_bytes = tm * L * itemsize
    temps = 8 * tm * L * 4                       # live f32 intermediates (generous)
    need = 4 * tile_bytes + weight_bufs * resident + temps
    vmem_limit = min(max(int(1.25 * need) + (2 << 20), 32 << 20),
                     max(int(0.75 * vmem_cap), 32 << 20))
    # TODO(synk): if `resident` alone exceeds the cap (very large C), switch to
    # a K-tiled reduction grid axis with an f32 VMEM accumulator.

    in_specs = [
        pl.BlockSpec((tm, L), lambda i: (i, 0)),           # streamed x tile
        pl.BlockSpec((L, L), lambda i: (0, 0), **wkw),     # resident w1
        pl.BlockSpec((1, L), lambda i: (0, 0), **wkw),     # resident b1
        pl.BlockSpec((L, L), lambda i: (0, 0), **wkw),     # resident w2
        pl.BlockSpec((1, L), lambda i: (0, 0), **wkw),     # resident b2
    ]
    operands = [x_folded, params.w1, params.b1, params.w2, params.b2]
    if params.avg is not None:
        in_specs.append(pl.BlockSpec((L, L), lambda i: (0, 0), **wkw))
        operands.append(params.avg)

    kernel = functools.partial(simba_kernel, channels=C, c_seg=c_seg, fold=fold)
    out = pl.pallas_call(
        kernel,
        out_shape=jax.ShapeDtypeStruct((folded_n, L), x.dtype),
        grid_spec=pl.GridSpec(
            grid=grid,
            in_specs=in_specs,
            out_specs=pl.BlockSpec((tm, L), lambda i: (i, 0)),
        ),
        compiler_params=pltpu.CompilerParams(
            dimension_semantics=("parallel",),
            vmem_limit_bytes=vmem_limit,
        ),
    )(*operands)

    out2d = out.reshape(n_rows, c_seg)           # free
    if n_rows != N:
        out2d = out2d[:N]
    if c_seg != C:
        out2d = out2d[:, :C]
    return out2d.reshape(orig_shape)


def simba_reference(x, w1, b1, w2, b2):
    xf = x.astype(jnp.float32)
    mean = jnp.mean(xf, axis=-1, keepdims=True)
    var = jnp.mean((xf - mean) ** 2, axis=-1, keepdims=True)
    xn = (xf - mean) * jax.lax.rsqrt(var + LN_EPS)
    h = jnp.maximum(xn @ w1 + b1, 0.0)
    y = h @ w2 + b2
    return (xf + y).astype(x.dtype)


def _make_linear_params(key, c):
    kw1, kb1, kw2, kb2 = jax.random.split(key, 4)
    bound = c ** -0.5
    w1 = jax.random.uniform(kw1, (c, c), jnp.float32, -bound, bound)
    b1 = jax.random.uniform(kb1, (c,), jnp.float32, -bound, bound)
    w2 = jax.random.uniform(kw2, (c, c), jnp.float32, -bound, bound)
    b2 = jax.random.uniform(kb2, (c,), jnp.float32, -bound, bound)
    return w1, b1, w2, b2


if __name__ == "__main__":
    key = jax.random.PRNGKey(0)
    kp, kx1, kx2, kx3, kp4, kx4 = jax.random.split(key, 6)

    channels = 32
    w1, b1, w2, b2 = _make_linear_params(kp, channels)
    params_f32 = prepare_simba_params(w1, b1, w2, b2, dot_dtype=jnp.float32)
    params_bf16 = prepare_simba_params(w1, b1, w2, b2, dot_dtype=jnp.bfloat16)

    # Case 1: (batch=2, seq=8, C=32), single tile, f32 MXU operands.
    x = jax.random.normal(kx1, (2, 8, channels), jnp.float32)
    out = jax.block_until_ready(simba_block(x, params_f32))
    ref = simba_reference(x, w1, b1, w2, b2)
    assert out.shape == x.shape
    assert jnp.allclose(out, ref, atol=5e-3, rtol=5e-3), \
        float(jnp.max(jnp.abs(out - ref)))

    # Case 2: ragged row count (3*37 rows) + multi-step grid with a ragged tail.
    x2 = jax.random.normal(kx2, (3, 37, channels), jnp.float32)
    out2 = jax.block_until_ready(simba_block(x2, params_f32, tm_target=8))
    ref2 = simba_reference(x2, w1, b1, w2, b2)
    assert out2.shape == x2.shape
    assert jnp.allclose(out2, ref2, atol=5e-3, rtol=5e-3), \
        float(jnp.max(jnp.abs(out2 - ref2)))

    # Case 3: production path with pre-cast bf16 MXU operands, looser tolerance.
    x3 = jax.random.normal(kx3, (4, 16, channels), jnp.float32)
    out3 = jax.block_until_ready(simba_block(x3, params_bf16))
    ref3 = simba_reference(x3, w1, b1, w2, b2)
    assert out3.shape == x3.shape
    assert jnp.allclose(out3, ref3, atol=5e-2, rtol=5e-2), \
        float(jnp.max(jnp.abs(out3 - ref3)))

    # Case 4: C=48 (doesn't divide 128) -> channel padding + fold=2 packing.
    c4 = 48
    w1c, b1c, w2c, b2c = _make_linear_params(kp4, c4)
    params_c4 = prepare_simba_params(w1c, b1c, w2c, b2c, dot_dtype=jnp.float32)
    x4 = jax.random.normal(kx4, (2, 13, c4), jnp.float32)
    out4 = jax.block_until_ready(simba_block(x4, params_c4))
    ref4 = simba_reference(x4, w1c, b1c, w2c, b2c)
    assert out4.shape == x4.shape
    assert jnp.allclose(out4, ref4, atol=5e-3, rtol=5e-3), \
        float(jnp.max(jnp.abs(out4 - ref4)))

    print("KERNEL_OK")
</pallas_src>

<mosaic_0001>
module attributes {stable_mosaic.version = 11 : i64} {
  func.func @simba_kernel(%arg0: i32, %arg1: memref<8x128xf32, #tpu.memory_space<vmem>>, %arg2: memref<128x128xf32, #tpu.memory_space<vmem>>, %arg3: memref<1x128xf32, #tpu.memory_space<vmem>>, %arg4: memref<128x128xf32, #tpu.memory_space<vmem>>, %arg5: memref<1x128xf32, #tpu.memory_space<vmem>>, %arg6: memref<128x128xf32, #tpu.memory_space<vmem>>, %arg7: memref<8x128xf32, #tpu.memory_space<vmem>>) attributes {dimension_semantics = [#tpu.dimension_semantics<parallel>], iteration_bounds = array<i64: 1>, scalar_prefetch = 0 : i64, scratch_operands = 0 : i64, tpu.core_type = #tpu.core_type<tc>, window_params = [{transform_indices = @transform_0, window_bounds = array<i64: 8, 128>}, {pipeline_mode = #tpu.pipeline_mode<synchronous>, transform_indices = @transform_1, window_bounds = array<i64: 128, 128>}, {pipeline_mode = #tpu.pipeline_mode<synchronous>, transform_indices = @transform_2, window_bounds = array<i64: 1, 128>}, {pipeline_mode = #tpu.pipeline_mode<synchronous>, transform_indices = @transform_3, window_bounds = array<i64: 128, 128>}, {pipeline_mode = #tpu.pipeline_mode<synchronous>, transform_indices = @transform_4, window_bounds = array<i64: 1, 128>}, {pipeline_mode = #tpu.pipeline_mode<synchronous>, transform_indices = @transform_5, window_bounds = array<i64: 128, 128>}, {transform_indices = @transform_6, window_bounds = array<i64: 8, 128>}]} {
    %c0 = arith.constant 0 : index
    %c0_0 = arith.constant 0 : index
    %0 = vector.load %arg1[%c0, %c0_0] : memref<8x128xf32, #tpu.memory_space<vmem>>, vector<8x128xf32>
    %c0_1 = arith.constant 0 : index
    %c0_2 = arith.constant 0 : index
    %1 = vector.load %arg6[%c0_1, %c0_2] : memref<128x128xf32, #tpu.memory_space<vmem>>, vector<128x128xf32>
    %cst = arith.constant dense<0.000000e+00> : vector<8x128xf32>
    %2 = tpu.matmul %0, %1, %cst {dimension_numbers = #tpu.dot_dimension_numbers<[1], [0], [0], [1], [0, 0, 1, 1], [], []>} : vector<8x128xf32>, vector<128x128xf32>, vector<8x128xf32> -> vector<8x128xf32>
    %3 = arith.subf %0, %2 : vector<8x128xf32>
    %4 = arith.mulf %3, %3 : vector<8x128xf32>
    %cst_3 = arith.constant dense<0.000000e+00> : vector<8x128xf32>
    %5 = tpu.matmul %4, %1, %cst_3 {dimension_numbers = #tpu.dot_dimension_numbers<[1], [0], [0], [1], [0, 0, 1, 1], [], []>} : vector<8x128xf32>, vector<128x128xf32>, vector<8x128xf32> -> vector<8x128xf32>
    %cst_4 = arith.constant 9.99999974E-6 : f32
    %6 = vector.broadcast %cst_4 : f32 to vector<8x128xf32>
    %7 = arith.addf %5, %6 : vector<8x128xf32>
    %8 = math.rsqrt %7 : vector<8x128xf32>
    %9 = arith.mulf %3, %8 : vector<8x128xf32>
    %c0_5 = arith.constant 0 : index
    %c0_6 = arith.constant 0 : index
    %10 = vector.load %arg2[%c0_5, %c0_6] : memref<128x128xf32, #tpu.memory_space<vmem>>, vector<128x128xf32>
    %cst_7 = arith.constant dense<0.000000e+00> : vector<8x128xf32>
    %11 = tpu.matmul %9, %10, %cst_7 {dimension_numbers = #tpu.dot_dimension_numbers<[1], [0], [0], [1], [0, 0, 1, 1], [], []>} : vector<8x128xf32>, vector<128x128xf32>, vector<8x128xf32> -> vector<8x128xf32>
    %c0_8 = arith.constant 0 : index
    %c0_9 = arith.constant 0 : index
    %12 = vector.load %arg3[%c0_8, %c0_9] : memref<1x128xf32, #tpu.memory_space<vmem>>, vector<1x128xf32>
    %13 = vector.broadcast %12 : vector<1x128xf32> to vector<8x128xf32>
    %14 = arith.addf %11, %13 : vector<8x128xf32>
    %cst_10 = arith.constant 0.000000e+00 : f32
    %15 = vector.broadcast %cst_10 : f32 to vector<8x128xf32>
    %16 = arith.maximumf %14, %15 : vector<8x128xf32>
    %c0_11 = arith.constant 0 : index
    %c0_12 = arith.constant 0 : index
    %17 = vector.load %arg4[%c0_11, %c0_12] : memref<128x128xf32, #tpu.memory_space<vmem>>, vector<128x128xf32>
    %cst_13 = arith.constant dense<0.000000e+00> : vector<8x128xf32>
    %18 = tpu.matmul %16, %17, %cst_13 {dimension_numbers = #tpu.dot_dimension_numbers<[1], [0], [0], [1], [0, 0, 1, 1], [], []>} : vector<8x128xf32>, vector<128x128xf32>, vector<8x128xf32> -> vector<8x128xf32>
    %c0_14 = arith.constant 0 : index
    %c0_15 = arith.constant 0 : index
    %19 = vector.load %arg5[%c0_14, %c0_15] : memref<1x128xf32, #tpu.memory_space<vmem>>, vector<1x128xf32>
    %20 = vector.broadcast %19 : vector<1x128xf32> to vector<8x128xf32>
    %21 = arith.addf %18, %20 : vector<8x128xf32>
    %22 = arith.addf %0, %21 : vector<8x128xf32>
    %c0_16 = arith.constant 0 : index
    %c0_17 = arith.constant 0 : index
    %23 = vector.load %arg7[%c0_16, %c0_17] : memref<8x128xf32, #tpu.memory_space<vmem>>, vector<8x128xf32>
    tpu.vector_store %arg7[%c0_16, %c0_17], %22 {strides = array<i32>} : memref<8x128xf32, #tpu.memory_space<vmem>>, vector<8x128xf32>,
    return
  }
  func.func @transform_0(%arg0: i32) -> (i32, i32) {
    %c0_i32 = arith.constant 0 : i32
    %c0_i32_0 = arith.constant 0 : i32
    return %arg0, %c0_i32 : i32, i32
  }
  func.func @transform_1(%arg0: i32) -> (i32, i32) {
    %c0_i32 = arith.constant 0 : i32
    %c0_i32_0 = arith.constant 0 : i32
    %c0_i32_1 = arith.constant 0 : i32
    return %c0_i32, %c0_i32_0 : i32, i32
  }
  func.func @transform_2(%arg0: i32) -> (i32, i32) {
    %c0_i32 = arith.constant 0 : i32
    %c0_i32_0 = arith.constant 0 : i32
    %c0_i32_1 = arith.constant 0 : i32
    return %c0_i32, %c0_i32_0 : i32, i32
  }
  func.func @transform_3(%arg0: i32) -> (i32, i32) {
    %c0_i32 = arith.constant 0 : i32
    %c0_i32_0 = arith.constant 0 : i32
    %c0_i32_1 = arith.constant 0 : i32
    return %c0_i32, %c0_i32_0 : i32, i32
  }
  func.func @transform_4(%arg0: i32) -> (i32, i32) {
    %c0_i32 = arith.constant 0 : i32
    %c0_i32_0 = arith.constant 0 : i32
    %c0_i32_1 = arith.constant 0 : i32
    return %c0_i32, %c0_i32_0 : i32, i32
  }
  func.func @transform_5(%arg0: i32) -> (i32, i32) {
    %c0_i32 = arith.constant 0 : i32
    %c0_i32_0 = arith.constant 0 : i32
    %c0_i32_1 = arith.constant 0 : i32
    return %c0_i32, %c0_i32_0 : i32, i32
  }
  func.func @transform_6(%arg0: i32) -> (i32, i32) {
    %c0_i32 = arith.constant 0 : i32
    %c0_i32_0 = arith.constant 0 : i32
    return %arg0, %c0_i32 : i32, i32
  }
}

</mosaic_0001>

<llo_original>
// kernel: tpu_custom_call.1
$region0: #{tpu_custom_call.1}
  #allocation0 [shape = 'u32[]', space=smem, size = 0x4, offset = 0x4, fixed_abs, tag = 'smem constant byte address 0x4 - core index']
  #allocation1 [shape = 'u32[72,128]{1,0:T(1,128)}', space=vmem, size = 0x9000, scoped, tag = 'internal scratch']
  %s0 = inlined_call_operand.hbm [shape: f32[8,128], index: 0, kind: input, shape index: {}]
  %s1 = inlined_call_operand.hbm [shape: f32[128,128], index: 1, kind: input, shape index: {}]
  %s2 = inlined_call_operand.vmem [shape: f32[1,128], index: 2, kind: input, shape index: {}]
  %s3 = inlined_call_operand.hbm [shape: f32[128,128], index: 3, kind: input, shape index: {}]
  %s4 = inlined_call_operand.vmem [shape: f32[1,128], index: 4, kind: input, shape index: {}]
  %s5 = inlined_call_operand.hbm [shape: f32[128,128], index: 5, kind: input, shape index: {}]
  %s6 = inlined_call_operand.hbm [shape: f32[8,128], index: 6, kind: output, shape index: {}]
  %s7 = sld [smem:[#allocation0]]
  $region50: #{tpu_custom_call.1} parent=0
    _
  %s9 = ssub.s32 1, %s7
  %s10 = scalar_select 0, %s9, %s7
  $region1: #{tpu_custom_call.1} parent=0
    #allocation2 [shape = 'u8[4096]{0}', space=vmem, size = 0x1000, scoped, tag = 'input window, operand 0, single buffered']
    #allocation3 [shape = 's32[1]{0}', space=sflag, size = 0x4, scoped, tag = 'scoped memory for tpu_custom_call.1']
    #allocation4 [shape = 's32[1]{0}', space=sflag, size = 0x4, scoped, tag = 'scoped memory for tpu_custom_call.1']
    #allocation5 [shape = 'u8[65536]{0}', space=vmem, size = 0x10000, scoped, tag = 'input window, operand 1, single buffered']
    #allocation6 [shape = 's32[1]{0}', space=sflag, size = 0x4, scoped, tag = 'scoped memory for tpu_custom_call.1']
    #allocation7 [shape = 'u8[65536]{0}', space=vmem, size = 0x10000, scoped, tag = 'input window, operand 3, single buffered']
    #allocation8 [shape = 'u8[65536]{0}', space=vmem, size = 0x10000, scoped, tag = 'input window, operand 5, single buffered']
    #allocation9 [shape = 's32[1]{0}', space=sflag, size = 0x4, scoped, tag = 'scoped memory for tpu_custom_call.1']
    #allocation10 [shape = 'u8[4096]{0}', space=vmem, size = 0x1000, scoped, tag = 'output window, operand 0, single buffered']
    %11 = vsyncpa [#allocation3], 0
    %12 = vsyncpa [#allocation6], 0
    %13 = vsyncpa [#allocation9], 0
    %14 = vsyncpa [#allocation4], 0
    // Predicated region
    $region2: #{tpu_custom_call.1} parent=1 // pred_check
      _
    $region3: #{tpu_custom_call.1} parent=1 // pred_check_branch
      %16 = sbr.rel (0) target = $region5
    $region4: #{tpu_custom_call.1} parent=1 // pred_region
      %18 = vsyncadd [#allocation3], 0
      %s20 = sshll.u32 %s0, 4
      %s21 = int_to_ptr.hbm [resolvable:$true] %s20
      %s22 = sshll.u32 [#allocation2], 4
      %s23 = int_to_ptr.vmem [resolvable:$true] %s22
      %25 = dma.hbm_to_vmem [thread:$0]  %s21, 128, %s23, [#allocation3]
    $region5: #{tpu_custom_call.1} parent=1 // pred_fallthru
      _
    // Predicated region
    $region6: #{tpu_custom_call.1} parent=1 // pred_check
      _
    $region7: #{tpu_custom_call.1} parent=1 // pred_check_branch
      %27 = sbr.rel (0) target = $region9
    $region8: #{tpu_custom_call.1} parent=1 // pred_region
      %29 = vsyncadd [#allocation6], 0
      %s30 = sshll.u32 %s1, 4
      %s31 = int_to_ptr.hbm [resolvable:$true] %s30
      %s32 = sshll.u32 [#allocation5], 4
      %s33 = int_to_ptr.vmem [resolvable:$true] %s32
      %38 = dma.hbm_to_vmem [thread:$0]  %s31, 2048, %s33, [#allocation6], 128, 128, 8
    $region9: #{tpu_custom_call.1} parent=1 // pred_fallthru
      _
    // Predicated region
    $region10: #{tpu_custom_call.1} parent=1 // pred_check
      _
    $region11: #{tpu_custom_call.1} parent=1 // pred_check_branch
      %40 = sbr.rel (0) target = $region13
    $region12: #{tpu_custom_call.1} parent=1 // pred_region
      _
    $region13: #{tpu_custom_call.1} parent=1 // pred_fallthru
      _
    // Predicated region
    $region14: #{tpu_custom_call.1} parent=1 // pred_check
      _
    $region15: #{tpu_custom_call.1} parent=1 // pred_check_branch
      %42 = sbr.rel (0) target = $region17
    $region16: #{tpu_custom_call.1} parent=1 // pred_region
      %44 = vsyncadd [#allocation6], 0
      %s45 = sshll.u32 %s3, 4
      %s46 = int_to_ptr.hbm [resolvable:$true] %s45
      %s47 = sshll.u32 [#allocation7], 4
      %s48 = int_to_ptr.vmem [resolvable:$true] %s47
      %53 = dma.hbm_to_vmem [thread:$0]  %s46, 2048, %s48, [#allocation6], 128, 128, 8
    $region17: #{tpu_custom_call.1} parent=1 // pred_fallthru
      _
    // Predicated region
    $region18: #{tpu_custom_call.1} parent=1 // pred_check
      _
    $region19: #{tpu_custom_call.1} parent=1 // pred_check_branch
      %55 = sbr.rel (0) target = $region21
    $region20: #{tpu_custom_call.1} parent=1 // pred_region
      _
    $region21: #{tpu_custom_call.1} parent=1 // pred_fallthru
      _
    // Predicated region
    $region22: #{tpu_custom_call.1} parent=1 // pred_check
      _
    $region23: #{tpu_custom_call.1} parent=1 // pred_check_branch
      %57 = sbr.rel (0) target = $region25
    $region24: #{tpu_custom_call.1} parent=1 // pred_region
      %59 = vsyncadd [#allocation9], 0
      %s60 = sshll.u32 %s5, 4
      %s61 = int_to_ptr.hbm [resolvable:$true] %s60
      %s62 = sshll.u32 [#allocation8], 4
      %s63 = int_to_ptr.vmem [resolvable:$true] %s62
      %68 = dma.hbm_to_vmem [thread:$0]  %s61, 2048, %s63, [#allocation9], 128, 128, 8
    $region25: #{tpu_custom_call.1} parent=1 // pred_fallthru
      _
    // Predicated region
    $region26: #{tpu_custom_call.1} parent=1 // pred_check
      _
    $region27: #{tpu_custom_call.1} parent=1 // pred_check_branch
      %70 = sbr.rel (0) target = $region29
    $region28: #{tpu_custom_call.1} parent=1 // pred_region
      %72 = dma.done [#allocation3], 128
    $region29: #{tpu_custom_call.1} parent=1 // pred_fallthru
      _
    // Predicated region
    $region30: #{tpu_custom_call.1} parent=1 // pred_check
      _
    $region31: #{tpu_custom_call.1} parent=1 // pred_check_branch
      %74 = sbr.rel (0) target = $region33
    $region32: #{tpu_custom_call.1} parent=1 // pred_region
      %76 = dma.done [#allocation6], 2048
    $region33: #{tpu_custom_call.1} parent=1 // pred_fallthru
      _
    // Predicated region
    $region34: #{tpu_custom_call.1} parent=1 // pred_check
      _
    $region35: #{tpu_custom_call.1} parent=1 // pred_check_branch
      %78 = sbr.rel (0) target = $region37
    $region36: #{tpu_custom_call.1} parent=1 // pred_region
      %80 = dma.done [#allocation6], 2048
    $region37: #{tpu_custom_call.1} parent=1 // pred_fallthru
      _
    // Predicated region
    $region38: #{tpu_custom_call.1} parent=1 // pred_check
      _
    $region39: #{tpu_custom_call.1} parent=1 // pred_check_branch
      %82 = sbr.rel (0) target = $region41
    $region40: #{tpu_custom_call.1} parent=1 // pred_region
      %84 = dma.done [#allocation9], 2048
    $region41: #{tpu_custom_call.1} parent=1 // pred_fallthru
      _
    %v85 = vld [vmem:[#allocation2] sm:$0xff]
    %v86 = vld [vmem:[#allocation8] sm:$0xff]
    %v87 = vld [vmem:[#allocation8 + $0x8] sm:$0xff]
    %v88 = vld [vmem:[#allocation8 + $0x10] sm:$0xff]
    %v89 = vld [vmem:[#allocation8 + $0x18] sm:$0xff]
    %v90 = vld [vmem:[#allocation8 + $0x20] sm:$0xff]
    %v91 = vld [vmem:[#allocation8 + $0x28] sm:$0xff]
    %v92 = vld [vmem:[#allocation8 + $0x30] sm:$0xff]
    %v93 = vld [vmem:[#allocation8 + $0x38] sm:$0xff]
    %v94 = vld [vmem:[#allocation8 + $0x40] sm:$0xff]
    %v95 = vld [vmem:[#allocation8 + $0x48] sm:$0xff]
    %v96 = vld [vmem:[#allocation8 + $0x50] sm:$0xff]
    %v97 = vld [vmem:[#allocation8 + $0x58] sm:$0xff]
    %v98 = vld [vmem:[#allocation8 + $0x60] sm:$0xff]
    %v99 = vld [vmem:[#allocation8 + $0x68] sm:$0xff]
    %v100 = vld [vmem:[#allocation8 + $0x70] sm:$0xff]
    %v101 = vld [vmem:[#allocation8 + $0x78] sm:$0xff]
    %102 = vmatpush.msra.mxu0 %v101
    %103 = vmatpush.msra.mxu0 %v100
    %104 = vmatpush.msra.mxu0 %v99
    %105 = vmatpush.msra.mxu0 %v98
    %106 = vmatpush.msra.mxu0 %v97
    %107 = vmatpush.msra.mxu0 %v96
    %108 = vmatpush.msra.mxu0 %v95
    %109 = vmatpush.msra.mxu0 %v94
    %110 = vmatpush.msra.mxu0 %v93
    %111 = vmatpush.msra.mxu0 %v92
    %112 = vmatpush.msra.mxu0 %v91
    %113 = vmatpush.msra.mxu0 %v90
    %114 = vmatpush.msra.mxu0 %v89
    %115 = vmatpush.msra.mxu0 %v88
    %116 = vmatpush.msra.mxu0 %v87
    %117 = vmatpush.msra.mxu0 %v86
    %118 = vmatmul.f32.gmra.mxu0 %v85
    %v119 = vpop.f32.mrf.mxu0
    %v120 = vadd.f32 0.0, %v119
    %121 = vdwg.mxu0
    %v122 = vsub.f32 %v85, %v120
    %v123 = vmul.f32 %v122, %v122
    %124 = vmatpush.msra.mxu0 %v101
    %125 = vmatpush.msra.mxu0 %v100
    %126 = vmatpush.msra.mxu0 %v99
    %127 = vmatpush.msra.mxu0 %v98
    %128 = vmatpush.msra.mxu0 %v97
    %129 = vmatpush.msra.mxu0 %v96
    %130 = vmatpush.msra.mxu0 %v95
    %131 = vmatpush.msra.mxu0 %v94
    %132 = vmatpush.msra.mxu0 %v93
    %133 = vmatpush.msra.mxu0 %v92
    %134 = vmatpush.msra.mxu0 %v91
    %135 = vmatpush.msra.mxu0 %v90
    %136 = vmatpush.msra.mxu0 %v89
    %137 = vmatpush.msra.mxu0 %v88
    %138 = vmatpush.msra.mxu0 %v87
    %139 = vmatpush.msra.mxu0 %v86
    %140 = vmatmul.f32.gmra.mxu0 %v123
    %v141 = vpop.f32.mrf.mxu0
    %v142 = vadd.f32 1e-05, %v141
    %143 = vdwg.mxu0
    %v144 = vrsqrt.pop %v142
    %v145 = vmul.f32 %v144, %v142
    %v146 = vmul.f32 %v145, %v144
    %v147 = vmul.f32 0.5, %v146
    %v148 = vsub.f32 1.5, %v147
    %v149 = vmul.f32 %v144, %v148
    %vm150 = vweird.f32 %v142
    %vm151 = vweird.f32 %v144
    %vm152 = vmor %vm150, %vm151
    %v153 = vsel %vm152, %v144, %v149
    %v154 = vmul.f32 %v122, %v153
    %v155 = vld [vmem:[#allocation5] sm:$0xff]
    %v156 = vld [vmem:[#allocation5 + $0x8] sm:$0xff]
    %v157 = vld [vmem:[#allocation5 + $0x10] sm:$0xff]
    %v158 = vld [vmem:[#allocation5 + $0x18] sm:$0xff]
    %v159 = vld [vmem:[#allocation5 + $0x20] sm:$0xff]
    %v160 = vld [vmem:[#allocation5 + $0x28] sm:$0xff]
    %v161 = vld [vmem:[#allocation5 + $0x30] sm:$0xff]
    %v162 = vld [vmem:[#allocation5 + $0x38] sm:$0xff]
    %v163 = vld [vmem:[#allocation5 + $0x40] sm:$0xff]
    %v164 = vld [vmem:[#allocation5 + $0x48] sm:$0xff]
    %v165 = vld [vmem:[#allocation5 + $0x50] sm:$0xff]
    %v166 = vld [vmem:[#allocation5 + $0x58] sm:$0xff]
    %v167 = vld [vmem:[#allocation5 + $0x60] sm:$0xff]
    %v168 = vld [vmem:[#allocation5 + $0x68] sm:$0xff]
    %v169 = vld [vmem:[#allocation5 + $0x70] sm:$0xff]
    %v170 = vld [vmem:[#allocation5 + $0x78] sm:$0xff]
    %v171 = vld [vmem:[%s2] sm:$0x1]
    %v173 = vperm.slane %v171, 0
    %175 = vmatpush.msra.mxu0 %v170
    %176 = vmatpush.msra.mxu0 %v169
    %177 = vmatpush.msra.mxu0 %v168
    %178 = vmatpush.msra.mxu0 %v167
    %179 = vmatpush.msra.mxu0 %v166
    %180 = vmatpush.msra.mxu0 %v165
    %181 = vmatpush.msra.mxu0 %v164
    %182 = vmatpush.msra.mxu0 %v163
    %183 = vmatpush.msra.mxu0 %v162
    %184 = vmatpush.msra.mxu0 %v161
    %185 = vmatpush.msra.mxu0 %v160
    %186 = vmatpush.msra.mxu0 %v159
    %187 = vmatpush.msra.mxu0 %v158
    %188 = vmatpush.msra.mxu0 %v157
    %189 = vmatpush.msra.mxu0 %v156
    %190 = vmatpush.msra.mxu0 %v155
    %191 = vmatmul.f32.gmra.mxu0 %v154
    %v192 = vpop.f32.mrf.mxu0
    %v193 = vadd.f32 %v173, %v192
    %194 = vdwg.mxu0
    %v195 = vmax.f32 %v193, 0.0
    %v196 = vld [vmem:[#allocation7] sm:$0xff]
    %v197 = vld [vmem:[#allocation7 + $0x8] sm:$0xff]
    %v198 = vld [vmem:[#allocation7 + $0x10] sm:$0xff]
    %v199 = vld [vmem:[#allocation7 + $0x18] sm:$0xff]
    %v200 = vld [vmem:[#allocation7 + $0x20] sm:$0xff]
    %v201 = vld [vmem:[#allocation7 + $0x28] sm:$0xff]
    %v202 = vld [vmem:[#allocation7 + $0x30] sm:$0xff]
    %v203 = vld [vmem:[#allocation7 + $0x38] sm:$0xff]
    %v204 = vld [vmem:[#allocation7 + $0x40] sm:$0xff]
    %v205 = vld [vmem:[#allocation7 + $0x48] sm:$0xff]
    %v206 = vld [vmem:[#allocation7 + $0x50] sm:$0xff]
    %v207 = vld [vmem:[#allocation7 + $0x58] sm:$0xff]
    %v208 = vld [vmem:[#allocation7 + $0x60] sm:$0xff]
    %v209 = vld [vmem:[#allocation7 + $0x68] sm:$0xff]
    %v210 = vld [vmem:[#allocation7 + $0x70] sm:$0xff]
    %v211 = vld [vmem:[#allocation7 + $0x78] sm:$0xff]
    %v212 = vld [vmem:[%s4] sm:$0x1]
    %v214 = vperm.slane %v212, 0
    %216 = vmatpush.msra.mxu0 %v211
    %217 = vmatpush.msra.mxu0 %v210
    %218 = vmatpush.msra.mxu0 %v209
    %219 = vmatpush.msra.mxu0 %v208
    %220 = vmatpush.msra.mxu0 %v207
    %221 = vmatpush.msra.mxu0 %v206
    %222 = vmatpush.msra.mxu0 %v205
    %223 = vmatpush.msra.mxu0 %v204
    %224 = vmatpush.msra.mxu0 %v203
    %225 = vmatpush.msra.mxu0 %v202
    %226 = vmatpush.msra.mxu0 %v201
    %227 = vmatpush.msra.mxu0 %v200
    %228 = vmatpush.msra.mxu0 %v199
    %229 = vmatpush.msra.mxu0 %v198
    %230 = vmatpush.msra.mxu0 %v197
    %231 = vmatpush.msra.mxu0 %v196
    %232 = vmatmul.f32.gmra.mxu0 %v195
    %v233 = vpop.f32.mrf.mxu0
    %v234 = vadd.f32 %v214, %v233
    %235 = vdwg.mxu0
    %v236 = vadd.f32 %v85, %v234
    %237 = vst [vmem:[#allocation10] sm:$0xff] %v236
    // Predicated region
    $region42: #{tpu_custom_call.1} parent=1 // pred_check
      _
    $region43: #{tpu_custom_call.1} parent=1 // pred_check_branch
      %239 = sbr.rel (0) target = $region45
    $region44: #{tpu_custom_call.1} parent=1 // pred_region
      %241 = vsyncadd [#allocation4], 0
      %s243 = sshll.u32 [#allocation10], 4
      %s244 = int_to_ptr.vmem [resolvable:$true] %s243
      %s245 = sshll.u32 %s6, 4
      %s246 = int_to_ptr.hbm [resolvable:$true] %s245
      %248 = dma.vmem_to_hbm [thread:$0]  %s244, 128, %s246, [#allocation4]
    $region45: #{tpu_custom_call.1} parent=1 // pred_fallthru
      _
    // Predicated region
    $region46: #{tpu_custom_call.1} parent=1 // pred_check
      _
    $region47: #{tpu_custom_call.1} parent=1 // pred_check_branch
      %250 = sbr.rel (0) target = $region49
    $region48: #{tpu_custom_call.1} parent=1 // pred_region
      %252 = dma.done [#allocation4], 128
    $region49: #{tpu_custom_call.1} parent=1 // pred_fallthru
      _
    %253 = vsyncpa [#allocation3], 1
    %254 = vsyncpa [#allocation6], 1
    %255 = vsyncpa [#allocation9], 1
    %256 = vsyncpa [#allocation4], 1

</llo_original>
